<compile_context>
chip_gen: v6e
topology: v6e:2x2x1
jax: 0.10.0
libtpu: 0.0.40
codegen_flags: <defaults>
</compile_context>

<pallas_src>
import jax
import jax.numpy as jnp
import numpy as np
from jax.experimental import pallas as pl
from jax.experimental.pallas import tpu as pltpu

NGRAM_SIZES = (2, 3, 4, 5)


def _round_up(x, m):
    return (x + m - 1) // m * m


def _make_kernel(word_len, vpad, bias_slot, t_sizes, d, nf):
    g = d // nf

    def kernel(ids_ref, m_ref, out_ref):
        tn = ids_ref.shape[0]
        kh = m_ref.shape[0]
        ids = ids_ref[...]                                          # (TN, Wd) int32
        lane = jax.lax.broadcasted_iota(jnp.int32, (tn, kh), 1)
        # In-kernel embedding "gather": one-hot over (char position, vocab slot) lanes.
        # Lane `bias_slot` is a constant 1 so the conv biases ride through the matmul.
        hot = lane == bias_slot
        for w in range(word_len):
            hot = jnp.logical_or(hot, lane == ids[:, w:w + 1] + w * vpad)
        oh = jnp.where(hot, 1.0, 0.0).astype(m_ref.dtype)           # 0/1 exact in bf16
        # Embedding lookup + all four Conv1d's + biases as ONE MXU matmul.
        conv = jnp.dot(oh, m_ref[...], preferred_element_type=jnp.float32)   # (TN, C) f32
        # Epilogue (f32): per filter max over valid time positions, ReLU, then torch's
        # cat(...).view(N*D, nf).max(1) as a contiguous-block max (channels were
        # residue-permuted in the wrapper).
        off = 0
        outs = []
        for t_len in t_sizes:
            pooled = conv[:, off:off + d]
            for t in range(1, t_len):
                pooled = jnp.maximum(pooled, conv[:, off + t * d:off + (t + 1) * d])
            pooled = jnp.maximum(pooled, 0.0)      # ReLU (the outer ReLU is then a no-op)
            grp = pooled[:, 0:g]
            for j in range(1, nf):
                grp = jnp.maximum(grp, pooled[:, j * g:(j + 1) * g])
            outs.append(grp)
            off += t_len * d
        out_ref[...] = jnp.concatenate(outs, axis=1).astype(out_ref.dtype)  # one (TN, D) store

    return kernel


def char_embedding_forward(text_char, text_char_mask, params, *,
                           block_n=512, weight_dtype=jnp.bfloat16):
    """Forward pass of CharEmbeddingLayer. `text_char_mask` is unused (as in the torch code)."""
    del text_char_mask
    B, L, Wd = text_char.shape
    emb = jnp.asarray(params["embedding"], jnp.float32)
    V, E = emb.shape
    D = params["conv"][0][0].shape[-1]
    nf = len(NGRAM_SIZES)
    assert D % nf == 0, "char_embedding_dim must be divisible by the number of ngram sizes"
    assert Wd >= max(NGRAM_SIZES), "max_word_length must cover the largest ngram"
    G = D // nf
    N = B * L

    # Words per grid step (multiple of 8).  v7x note: keep block_n small enough that the
    # grid has >= a few steps so dimension_semantics=("parallel",) can feed both TensorCores.
    TN = min(block_n, _round_up(N, 8))
    N_pad = _round_up(N, TN)

    Vpad = _round_up(V + 1, 8)          # spare slot at index V = the constant-1 bias lane
    KH = Wd * Vpad
    t_sizes = tuple(Wd - k + 1 for k in NGRAM_SIZES)
    C = sum(t_sizes) * D

    # Residue-permute conv output channels so torch's cat(...).view(N*D, nf).max(1)
    # becomes a max over nf contiguous lane blocks of width G inside the kernel.
    perm = np.array([nf * (p % G) + p // G for p in range(D)], dtype=np.int32)

    # Fold embedding table + block-Toeplitz conv weights + biases into one matrix:
    #   M[w*Vpad + v, off_f + t*D + d] = sum_e emb[v, e] * W_f[w - t, e, perm[d]]
    #   M[V,          off_f + t*D + d] = b_f[perm[d]]              (constant-1 bias lane)
    # TODO(synk): for large char vocabularies (Wd*Vpad, C) may exceed VMEM; fall back to
    # streaming embedded rows against a (Wd*E, C) Toeplitz weight in that regime.
    hi = jax.lax.Precision.HIGHEST
    M = jnp.zeros((KH, C), jnp.float32)
    off = 0
    for (w, b), k in zip(params["conv"], NGRAM_SIZES):
        T = Wd - k + 1
        wp = jnp.asarray(w, jnp.float32)[:, :, perm]                  # (k, E, D)
        P = jnp.einsum("ve,ked->kvd", emb, wp, precision=hi)          # (k, V, D)
        bp = jnp.asarray(b, jnp.float32)[perm]                        # (D,)
        for t in range(T):
            for tau in range(k):
                row = (t + tau) * Vpad
                M = M.at[row:row + V, off + t * D:off + (t + 1) * D].add(P[tau])
        M = M.at[V, off:off + T * D].add(jnp.tile(bp, T))
        off += T * D
    M = M.astype(weight_dtype)

    ids = text_char.reshape(N, Wd).astype(jnp.int32)
    if N_pad != N:
        ids = jnp.pad(ids, ((0, N_pad - N), (0, 0)))    # id 0 -> zero embedding row

    kernel = _make_kernel(Wd, Vpad, V, t_sizes, D, nf)
    out = pl.pallas_call(
        kernel,
        out_shape=jax.ShapeDtypeStruct((N_pad, D), jnp.float32),
        grid=(N_pad // TN,),
        in_specs=[pl.BlockSpec((TN, Wd), lambda n: (n, 0)),           # streamed int32 ids
                  pl.BlockSpec((KH, C), lambda n: (0, 0))],           # VMEM-resident weights
        out_specs=pl.BlockSpec((TN, D), lambda n: (n, 0)),
        compiler_params=pltpu.CompilerParams(dimension_semantics=("parallel",)),
    )(ids, M)
    return out[:N].reshape(B, L, D)


def reference_forward(text_char, params):
    """Pure-JAX f32 reference (unpermuted weights, literal torch op order)."""
    B, L, Wd = text_char.shape
    emb = jnp.asarray(params["embedding"], jnp.float32)
    x = jnp.take(emb, text_char.reshape(B * L, Wd), axis=0)           # (N, Wd, E)
    D = params["conv"][0][0].shape[-1]
    hi = jax.lax.Precision.HIGHEST
    pooled = []
    for (w, b), k in zip(params["conv"], NGRAM_SIZES):
        out = jax.lax.conv_general_dilated(
            x, jnp.asarray(w, jnp.float32), window_strides=(1,), padding="VALID",
            dimension_numbers=("NWC", "WIO", "NWC"), precision=hi)    # (N, T, D)
        out = out + jnp.asarray(b, jnp.float32).reshape(1, 1, D)
        pooled.append(jnp.max(jax.nn.relu(out), axis=1))              # (N, D)
    cat = jnp.concatenate(pooled, axis=1)                             # (N, nf*D)
    res = jnp.max(jax.nn.relu(cat).reshape(B * L * D, -1), axis=1)
    return res.reshape(B, L, D)


if __name__ == "__main__":
    key = jax.random.PRNGKey(0)
    vocab_size = 20
    E = 16   # char_single_embedding_dim
    D = 32   # char_embedding_dim == num_filters
    B, L, Wd = 2, 8, 8   # batch, max_length, max_word_length

    k_emb, k_tok, *k_conv = jax.random.split(key, 2 + 2 * len(NGRAM_SIZES))
    emb = jax.random.normal(k_emb, (vocab_size, E), jnp.float32)
    emb = emb.at[0].set(0.0)   # nn.Embedding padding_idx=0
    conv = []
    for i, k in enumerate(NGRAM_SIZES):
        bound = 1.0 / float(E * k) ** 0.5
        w = jax.random.uniform(k_conv[2 * i], (k, E, D), jnp.float32, -bound, bound)
        b = jax.random.uniform(k_conv[2 * i + 1], (D,), jnp.float32, -bound, bound)
        conv.append((w, b))
    params = {"embedding": emb, "conv": conv}

    text_char = jax.random.randint(k_tok, (B, L, Wd), 0, vocab_size, jnp.int32)
    text_char_mask = (text_char != 0).astype(jnp.float32)

    out = char_embedding_forward(text_char, text_char_mask, params)
    out = jax.block_until_ready(out)
    ref = reference_forward(text_char, params)
    assert out.shape == (B, L, D)
    # bf16 conv weights (per perf review) -> loosened tolerance; structure is otherwise exact.
    np.testing.assert_allclose(np.asarray(out), np.asarray(ref), rtol=2e-2, atol=2e-2)
    print("KERNEL_OK")
</pallas_src>

<mosaic_0001>
module attributes {stable_mosaic.version = 11 : i64} {
  func.func @kernel(%arg0: i32, %arg1: memref<16x8xi32, #tpu.memory_space<vmem>>, %arg2: memref<192x704xbf16, #tpu.memory_space<vmem>>, %arg3: memref<16x32xf32, #tpu.memory_space<vmem>>) attributes {dimension_semantics = [#tpu.dimension_semantics<parallel>], iteration_bounds = array<i64: 1>, scalar_prefetch = 0 : i64, scratch_operands = 0 : i64, tpu.core_type = #tpu.core_type<tc>, window_params = [{transform_indices = @transform_0, window_bounds = array<i64: 16, 8>}, {pipeline_mode = #tpu.pipeline_mode<synchronous>, transform_indices = @transform_1, window_bounds = array<i64: 192, 704>}, {transform_indices = @transform_2, window_bounds = array<i64: 16, 32>}]} {
    %c0 = arith.constant 0 : index
    %c0_0 = arith.constant 0 : index
    %0 = vector.load %arg1[%c0, %c0_0] : memref<16x8xi32, #tpu.memory_space<vmem>>, vector<16x8xi32>
    %1 = tpu.iota {dimensions = array<i32: 1>} : vector<16x192xi32>
    %c20_i32 = arith.constant 20 : i32
    %2 = vector.broadcast %c20_i32 : i32 to vector<16x192xi32>
    %3 = arith.cmpi eq, %1, %2 : vector<16x192xi32>
    %4 = vector.extract_strided_slice %0 {offsets = [0, 0], sizes = [16, 1], strides = [1, 1]} : vector<16x8xi32> to vector<16x1xi32>
    %c0_i32 = arith.constant 0 : i32
    %5 = vector.broadcast %c0_i32 : i32 to vector<16x1xi32>
    %6 = arith.addi %4, %5 : vector<16x1xi32>
    %7 = vector.broadcast %6 : vector<16x1xi32> to vector<16x192xi32>
    %8 = arith.cmpi eq, %1, %7 : vector<16x192xi32>
    %9 = arith.ori %3, %8 : vector<16x192xi1>
    %10 = vector.extract_strided_slice %0 {offsets = [0, 1], sizes = [16, 1], strides = [1, 1]} : vector<16x8xi32> to vector<16x1xi32>
    %c24_i32 = arith.constant 24 : i32
    %11 = vector.broadcast %c24_i32 : i32 to vector<16x1xi32>
    %12 = arith.addi %10, %11 : vector<16x1xi32>
    %13 = vector.broadcast %12 : vector<16x1xi32> to vector<16x192xi32>
    %14 = arith.cmpi eq, %1, %13 : vector<16x192xi32>
    %15 = arith.ori %9, %14 : vector<16x192xi1>
    %16 = vector.extract_strided_slice %0 {offsets = [0, 2], sizes = [16, 1], strides = [1, 1]} : vector<16x8xi32> to vector<16x1xi32>
    %c48_i32 = arith.constant 48 : i32
    %17 = vector.broadcast %c48_i32 : i32 to vector<16x1xi32>
    %18 = arith.addi %16, %17 : vector<16x1xi32>
    %19 = vector.broadcast %18 : vector<16x1xi32> to vector<16x192xi32>
    %20 = arith.cmpi eq, %1, %19 : vector<16x192xi32>
    %21 = arith.ori %15, %20 : vector<16x192xi1>
    %22 = vector.extract_strided_slice %0 {offsets = [0, 3], sizes = [16, 1], strides = [1, 1]} : vector<16x8xi32> to vector<16x1xi32>
    %c72_i32 = arith.constant 72 : i32
    %23 = vector.broadcast %c72_i32 : i32 to vector<16x1xi32>
    %24 = arith.addi %22, %23 : vector<16x1xi32>
    %25 = vector.broadcast %24 : vector<16x1xi32> to vector<16x192xi32>
    %26 = arith.cmpi eq, %1, %25 : vector<16x192xi32>
    %27 = arith.ori %21, %26 : vector<16x192xi1>
    %28 = vector.extract_strided_slice %0 {offsets = [0, 4], sizes = [16, 1], strides = [1, 1]} : vector<16x8xi32> to vector<16x1xi32>
    %c96_i32 = arith.constant 96 : i32
    %29 = vector.broadcast %c96_i32 : i32 to vector<16x1xi32>
    %30 = arith.addi %28, %29 : vector<16x1xi32>
    %31 = vector.broadcast %30 : vector<16x1xi32> to vector<16x192xi32>
    %32 = arith.cmpi eq, %1, %31 : vector<16x192xi32>
    %33 = arith.ori %27, %32 : vector<16x192xi1>
    %34 = vector.extract_strided_slice %0 {offsets = [0, 5], sizes = [16, 1], strides = [1, 1]} : vector<16x8xi32> to vector<16x1xi32>
    %c120_i32 = arith.constant 120 : i32
    %35 = vector.broadcast %c120_i32 : i32 to vector<16x1xi32>
    %36 = arith.addi %34, %35 : vector<16x1xi32>
    %37 = vector.broadcast %36 : vector<16x1xi32> to vector<16x192xi32>
    %38 = arith.cmpi eq, %1, %37 : vector<16x192xi32>
    %39 = arith.ori %33, %38 : vector<16x192xi1>
    %40 = vector.extract_strided_slice %0 {offsets = [0, 6], sizes = [16, 1], strides = [1, 1]} : vector<16x8xi32> to vector<16x1xi32>
    %c144_i32 = arith.constant 144 : i32
    %41 = vector.broadcast %c144_i32 : i32 to vector<16x1xi32>
    %42 = arith.addi %40, %41 : vector<16x1xi32>
    %43 = vector.broadcast %42 : vector<16x1xi32> to vector<16x192xi32>
    %44 = arith.cmpi eq, %1, %43 : vector<16x192xi32>
    %45 = arith.ori %39, %44 : vector<16x192xi1>
    %46 = vector.extract_strided_slice %0 {offsets = [0, 7], sizes = [16, 1], strides = [1, 1]} : vector<16x8xi32> to vector<16x1xi32>
    %c168_i32 = arith.constant 168 : i32
    %47 = vector.broadcast %c168_i32 : i32 to vector<16x1xi32>
    %48 = arith.addi %46, %47 : vector<16x1xi32>
    %49 = vector.broadcast %48 : vector<16x1xi32> to vector<16x192xi32>
    %50 = arith.cmpi eq, %1, %49 : vector<16x192xi32>
    %51 = arith.ori %45, %50 : vector<16x192xi1>
    %cst = arith.constant 1.000000e+00 : f32
    %cst_1 = arith.constant 0.000000e+00 : f32
    %52 = vector.broadcast %cst : f32 to vector<16x192xf32>
    %53 = vector.broadcast %cst_1 : f32 to vector<16x192xf32>
    %54 = arith.select %51, %52, %53 : vector<16x192xi1>, vector<16x192xf32>
    %55 = arith.truncf %54 : vector<16x192xf32> to vector<16x192xbf16>
    %c0_2 = arith.constant 0 : index
    %c0_3 = arith.constant 0 : index
    %56 = vector.load %arg2[%c0_2, %c0_3] : memref<192x704xbf16, #tpu.memory_space<vmem>>, vector<192x704xbf16>
    %cst_4 = arith.constant dense<0.000000e+00> : vector<16x704xf32>
    %57 = tpu.matmul %55, %56, %cst_4 {dimension_numbers = #tpu.dot_dimension_numbers<[1], [0], [0], [1], [0, 0, 1, 1], [], []>} : vector<16x192xbf16>, vector<192x704xbf16>, vector<16x704xf32> -> vector<16x704xf32>
    %58 = vector.extract_strided_slice %57 {offsets = [0, 0], sizes = [16, 32], strides = [1, 1]} : vector<16x704xf32> to vector<16x32xf32>
    %59 = vector.extract_strided_slice %57 {offsets = [0, 32], sizes = [16, 32], strides = [1, 1]} : vector<16x704xf32> to vector<16x32xf32>
    %60 = arith.maximumf %58, %59 : vector<16x32xf32>
    %61 = vector.extract_strided_slice %57 {offsets = [0, 64], sizes = [16, 32], strides = [1, 1]} : vector<16x704xf32> to vector<16x32xf32>
    %62 = arith.maximumf %60, %61 : vector<16x32xf32>
    %63 = vector.extract_strided_slice %57 {offsets = [0, 96], sizes = [16, 32], strides = [1, 1]} : vector<16x704xf32> to vector<16x32xf32>
    %64 = arith.maximumf %62, %63 : vector<16x32xf32>
    %65 = vector.extract_strided_slice %57 {offsets = [0, 128], sizes = [16, 32], strides = [1, 1]} : vector<16x704xf32> to vector<16x32xf32>
    %66 = arith.maximumf %64, %65 : vector<16x32xf32>
    %67 = vector.extract_strided_slice %57 {offsets = [0, 160], sizes = [16, 32], strides = [1, 1]} : vector<16x704xf32> to vector<16x32xf32>
    %68 = arith.maximumf %66, %67 : vector<16x32xf32>
    %69 = vector.extract_strided_slice %57 {offsets = [0, 192], sizes = [16, 32], strides = [1, 1]} : vector<16x704xf32> to vector<16x32xf32>
    %70 = arith.maximumf %68, %69 : vector<16x32xf32>
    %cst_5 = arith.constant 0.000000e+00 : f32
    %71 = vector.broadcast %cst_5 : f32 to vector<16x32xf32>
    %72 = arith.maximumf %70, %71 : vector<16x32xf32>
    %73 = vector.extract_strided_slice %72 {offsets = [0, 0], sizes = [16, 8], strides = [1, 1]} : vector<16x32xf32> to vector<16x8xf32>
    %74 = vector.extract_strided_slice %72 {offsets = [0, 8], sizes = [16, 8], strides = [1, 1]} : vector<16x32xf32> to vector<16x8xf32>
    %75 = arith.maximumf %73, %74 : vector<16x8xf32>
    %76 = vector.extract_strided_slice %72 {offsets = [0, 16], sizes = [16, 8], strides = [1, 1]} : vector<16x32xf32> to vector<16x8xf32>
    %77 = arith.maximumf %75, %76 : vector<16x8xf32>
    %78 = vector.extract_strided_slice %72 {offsets = [0, 24], sizes = [16, 8], strides = [1, 1]} : vector<16x32xf32> to vector<16x8xf32>
    %79 = arith.maximumf %77, %78 : vector<16x8xf32>
    %80 = vector.extract_strided_slice %57 {offsets = [0, 224], sizes = [16, 32], strides = [1, 1]} : vector<16x704xf32> to vector<16x32xf32>
    %81 = vector.extract_strided_slice %57 {offsets = [0, 256], sizes = [16, 32], strides = [1, 1]} : vector<16x704xf32> to vector<16x32xf32>
    %82 = arith.maximumf %80, %81 : vector<16x32xf32>
    %83 = vector.extract_strided_slice %57 {offsets = [0, 288], sizes = [16, 32], strides = [1, 1]} : vector<16x704xf32> to vector<16x32xf32>
    %84 = arith.maximumf %82, %83 : vector<16x32xf32>
    %85 = vector.extract_strided_slice %57 {offsets = [0, 320], sizes = [16, 32], strides = [1, 1]} : vector<16x704xf32> to vector<16x32xf32>
    %86 = arith.maximumf %84, %85 : vector<16x32xf32>
    %87 = vector.extract_strided_slice %57 {offsets = [0, 352], sizes = [16, 32], strides = [1, 1]} : vector<16x704xf32> to vector<16x32xf32>
    %88 = arith.maximumf %86, %87 : vector<16x32xf32>
    %89 = vector.extract_strided_slice %57 {offsets = [0, 384], sizes = [16, 32], strides = [1, 1]} : vector<16x704xf32> to vector<16x32xf32>
    %90 = arith.maximumf %88, %89 : vector<16x32xf32>
    %cst_6 = arith.constant 0.000000e+00 : f32
    %91 = vector.broadcast %cst_6 : f32 to vector<16x32xf32>
    %92 = arith.maximumf %90, %91 : vector<16x32xf32>
    %93 = vector.extract_strided_slice %92 {offsets = [0, 0], sizes = [16, 8], strides = [1, 1]} : vector<16x32xf32> to vector<16x8xf32>
    %94 = vector.extract_strided_slice %92 {offsets = [0, 8], sizes = [16, 8], strides = [1, 1]} : vector<16x32xf32> to vector<16x8xf32>
    %95 = arith.maximumf %93, %94 : vector<16x8xf32>
    %96 = vector.extract_strided_slice %92 {offsets = [0, 16], sizes = [16, 8], strides = [1, 1]} : vector<16x32xf32> to vector<16x8xf32>
    %97 = arith.maximumf %95, %96 : vector<16x8xf32>
    %98 = vector.extract_strided_slice %92 {offsets = [0, 24], sizes = [16, 8], strides = [1, 1]} : vector<16x32xf32> to vector<16x8xf32>
    %99 = arith.maximumf %97, %98 : vector<16x8xf32>
    %100 = vector.extract_strided_slice %57 {offsets = [0, 416], sizes = [16, 32], strides = [1, 1]} : vector<16x704xf32> to vector<16x32xf32>
    %101 = vector.extract_strided_slice %57 {offsets = [0, 448], sizes = [16, 32], strides = [1, 1]} : vector<16x704xf32> to vector<16x32xf32>
    %102 = arith.maximumf %100, %101 : vector<16x32xf32>
    %103 = vector.extract_strided_slice %57 {offsets = [0, 480], sizes = [16, 32], strides = [1, 1]} : vector<16x704xf32> to vector<16x32xf32>
    %104 = arith.maximumf %102, %103 : vector<16x32xf32>
    %105 = vector.extract_strided_slice %57 {offsets = [0, 512], sizes = [16, 32], strides = [1, 1]} : vector<16x704xf32> to vector<16x32xf32>
    %106 = arith.maximumf %104, %105 : vector<16x32xf32>
    %107 = vector.extract_strided_slice %57 {offsets = [0, 544], sizes = [16, 32], strides = [1, 1]} : vector<16x704xf32> to vector<16x32xf32>
    %108 = arith.maximumf %106, %107 : vector<16x32xf32>
    %cst_7 = arith.constant 0.000000e+00 : f32
    %109 = vector.broadcast %cst_7 : f32 to vector<16x32xf32>
    %110 = arith.maximumf %108, %109 : vector<16x32xf32>
    %111 = vector.extract_strided_slice %110 {offsets = [0, 0], sizes = [16, 8], strides = [1, 1]} : vector<16x32xf32> to vector<16x8xf32>
    %112 = vector.extract_strided_slice %110 {offsets = [0, 8], sizes = [16, 8], strides = [1, 1]} : vector<16x32xf32> to vector<16x8xf32>
    %113 = arith.maximumf %111, %112 : vector<16x8xf32>
    %114 = vector.extract_strided_slice %110 {offsets = [0, 16], sizes = [16, 8], strides = [1, 1]} : vector<16x32xf32> to vector<16x8xf32>
    %115 = arith.maximumf %113, %114 : vector<16x8xf32>
    %116 = vector.extract_strided_slice %110 {offsets = [0, 24], sizes = [16, 8], strides = [1, 1]} : vector<16x32xf32> to vector<16x8xf32>
    %117 = arith.maximumf %115, %116 : vector<16x8xf32>
    %118 = vector.extract_strided_slice %57 {offsets = [0, 576], sizes = [16, 32], strides = [1, 1]} : vector<16x704xf32> to vector<16x32xf32>
    %119 = vector.extract_strided_slice %57 {offsets = [0, 608], sizes = [16, 32], strides = [1, 1]} : vector<16x704xf32> to vector<16x32xf32>
    %120 = arith.maximumf %118, %119 : vector<16x32xf32>
    %121 = vector.extract_strided_slice %57 {offsets = [0, 640], sizes = [16, 32], strides = [1, 1]} : vector<16x704xf32> to vector<16x32xf32>
    %122 = arith.maximumf %120, %121 : vector<16x32xf32>
    %123 = vector.extract_strided_slice %57 {offsets = [0, 672], sizes = [16, 32], strides = [1, 1]} : vector<16x704xf32> to vector<16x32xf32>
    %124 = arith.maximumf %122, %123 : vector<16x32xf32>
    %cst_8 = arith.constant 0.000000e+00 : f32
    %125 = vector.broadcast %cst_8 : f32 to vector<16x32xf32>
    %126 = arith.maximumf %124, %125 : vector<16x32xf32>
    %127 = vector.extract_strided_slice %126 {offsets = [0, 0], sizes = [16, 8], strides = [1, 1]} : vector<16x32xf32> to vector<16x8xf32>
    %128 = vector.extract_strided_slice %126 {offsets = [0, 8], sizes = [16, 8], strides = [1, 1]} : vector<16x32xf32> to vector<16x8xf32>
    %129 = arith.maximumf %127, %128 : vector<16x8xf32>
    %130 = vector.extract_strided_slice %126 {offsets = [0, 16], sizes = [16, 8], strides = [1, 1]} : vector<16x32xf32> to vector<16x8xf32>
    %131 = arith.maximumf %129, %130 : vector<16x8xf32>
    %132 = vector.extract_strided_slice %126 {offsets = [0, 24], sizes = [16, 8], strides = [1, 1]} : vector<16x32xf32> to vector<16x8xf32>
    %133 = arith.maximumf %131, %132 : vector<16x8xf32>
    %134 = tpu.concatenate %79, %99, %117, %133 in 1 : vector<16x8xf32>, vector<16x8xf32>, vector<16x8xf32>, vector<16x8xf32> -> vector<16x32xf32>
    %c0_9 = arith.constant 0 : index
    %c0_10 = arith.constant 0 : index
    %135 = vector.load %arg3[%c0_9, %c0_10] : memref<16x32xf32, #tpu.memory_space<vmem>>, vector<16x32xf32>
    tpu.vector_store %arg3[%c0_9, %c0_10], %134 {strides = array<i32>} : memref<16x32xf32, #tpu.memory_space<vmem>>, vector<16x32xf32>,
    return
  }
  func.func @transform_0(%arg0: i32) -> (i32, i32) {
    %c0_i32 = arith.constant 0 : i32
    %c0_i32_0 = arith.constant 0 : i32
    return %arg0, %c0_i32 : i32, i32
  }
  func.func @transform_1(%arg0: i32) -> (i32, i32) {
    %c0_i32 = arith.constant 0 : i32
    %c0_i32_0 = arith.constant 0 : i32
    %c0_i32_1 = arith.constant 0 : i32
    return %c0_i32, %c0_i32_0 : i32, i32
  }
  func.func @transform_2(%arg0: i32) -> (i32, i32) {
    %c0_i32 = arith.constant 0 : i32
    %c0_i32_0 = arith.constant 0 : i32
    return %arg0, %c0_i32 : i32, i32
  }
}

</mosaic_0001>

<llo_original>
// kernel: tpu_custom_call.1
$region0: #{tpu_custom_call.1}
  #allocation0 [shape = 'u32[]', space=smem, size = 0x4, offset = 0x4, fixed_abs, tag = 'smem constant byte address 0x4 - core index']
  #allocation1 [shape = 'u32[144,128]{1,0:T(1,128)}', space=vmem, size = 0x12000, scoped, tag = 'internal scratch']
  %s0 = inlined_call_operand.vmem [shape: s32[16,8], index: 0, kind: input, shape index: {}]
  %s1 = inlined_call_operand.hbm [shape: bf16[192,704], index: 1, kind: input, shape index: {}]
  %s2 = inlined_call_operand.hbm [shape: f32[16,32], index: 2, kind: output, shape index: {}]
  %s3 = sld [smem:[#allocation0]]
  $region22: #{tpu_custom_call.1} parent=0
    _
  %s5 = ssub.s32 1, %s3
  %s6 = scalar_select 0, %s5, %s3
  $region1: #{tpu_custom_call.1} parent=0
    #allocation2 [shape = 'u8[294912]{0}', space=vmem, size = 0x48000, scoped, tag = 'input window, operand 1, single buffered']
    #allocation3 [shape = 's32[1]{0}', space=sflag, size = 0x4, scoped, tag = 'scoped memory for tpu_custom_call.1']
    #allocation4 [shape = 's32[1]{0}', space=sflag, size = 0x4, scoped, tag = 'scoped memory for tpu_custom_call.1']
    #allocation5 [shape = 'u8[8192]{0}', space=vmem, size = 0x2000, scoped, tag = 'output window, operand 0, single buffered']
    %7 = vsyncpa [#allocation3], 0
    %8 = vsyncpa [#allocation4], 0
    // Predicated region
    $region2: #{tpu_custom_call.1} parent=1 // pred_check
      _
    $region3: #{tpu_custom_call.1} parent=1 // pred_check_branch
      %10 = sbr.rel (0) target = $region5
    $region4: #{tpu_custom_call.1} parent=1 // pred_region
      _
    $region5: #{tpu_custom_call.1} parent=1 // pred_fallthru
      _
    // Predicated region
    $region6: #{tpu_custom_call.1} parent=1 // pred_check
      _
    $region7: #{tpu_custom_call.1} parent=1 // pred_check_branch
      %12 = sbr.rel (0) target = $region9
    $region8: #{tpu_custom_call.1} parent=1 // pred_region
      %s14 = ssub.s32 9216, 9216
      %15 = vsyncadd [#allocation3], %s14
      %s16 = sshll.u32 [#allocation2], 4
      %s17 = int_to_ptr.vmem [resolvable:$true] %s16
      %22 = dma.hbm_to_vmem [thread:$0]  %s1, 9216, %s17, [#allocation3], 384, 384, 24
    $region9: #{tpu_custom_call.1} parent=1 // pred_fallthru
      _
    // Predicated region
    $region10: #{tpu_custom_call.1} parent=1 // pred_check
      _
    $region11: #{tpu_custom_call.1} parent=1 // pred_check_branch
      %24 = sbr.rel (0) target = $region13
    $region12: #{tpu_custom_call.1} parent=1 // pred_region
      %25 = dma.done [#allocation3], 9216
    $region13: #{tpu_custom_call.1} parent=1 // pred_fallthru
      _
    %v27 = vld [vmem:[%s0] sm:$0xff]
    %v28 = vld [vmem:[%s0 + $0x8] sm:$0xff]
    %v29 = vlaneseq
    %v30 = vand.u32 %v29, 127
    %v31 = vadd.s32 %v30, 128
    %vm32 = vcmp.eq.s32.totalorder %v30, 20
    %vm33 = vcmp.eq.s32.totalorder %v31, 20
    %34 = vset.pattern.permute.xlu0 0
    %35 = vperm.xlu0 %34, %v27
    %v36 = vpop.permute.xlu0 %35
    %37 = vset.pattern.permute.xlu0 0
    %38 = vperm.xlu0 %37, %v28
    %v39 = vpop.permute.xlu0 %38
    %vm40 = vcmp.eq.s32.totalorder %v30, %v36
    %vm41 = vcmp.eq.s32.totalorder %v31, %v36
    %vm42 = vcmp.eq.s32.totalorder %v30, %v39
    %vm43 = vcmp.eq.s32.totalorder %v31, %v39
    %vm44 = vmor %vm32, %vm40
    %vm45 = vmor %vm33, %vm41
    %vm46 = vmor %vm32, %vm42
    %vm47 = vmor %vm33, %vm43
    %v48 = vadd.s32 %v27, 24
    %v49 = vadd.s32 %v28, 24
    %50 = vset.pattern.permute.xlu0 1
    %51 = vperm.xlu0 %50, %v48
    %v52 = vpop.permute.xlu0 %51
    %53 = vset.pattern.permute.xlu0 1
    %54 = vperm.xlu0 %53, %v49
    %v55 = vpop.permute.xlu0 %54
    %vm56 = vcmp.eq.s32.totalorder %v30, %v52
    %vm57 = vcmp.eq.s32.totalorder %v31, %v52
    %vm58 = vcmp.eq.s32.totalorder %v30, %v55
    %vm59 = vcmp.eq.s32.totalorder %v31, %v55
    %vm60 = vmor %vm44, %vm56
    %vm61 = vmor %vm45, %vm57
    %vm62 = vmor %vm46, %vm58
    %vm63 = vmor %vm47, %vm59
    %v64 = vadd.s32 %v27, 48
    %v65 = vadd.s32 %v28, 48
    %66 = vset.pattern.permute.xlu0 2
    %67 = vperm.xlu0 %66, %v64
    %v68 = vpop.permute.xlu0 %67
    %69 = vset.pattern.permute.xlu0 2
    %70 = vperm.xlu0 %69, %v65
    %v71 = vpop.permute.xlu0 %70
    %vm72 = vcmp.eq.s32.totalorder %v30, %v68
    %vm73 = vcmp.eq.s32.totalorder %v31, %v68
    %vm74 = vcmp.eq.s32.totalorder %v30, %v71
    %vm75 = vcmp.eq.s32.totalorder %v31, %v71
    %vm76 = vmor %vm60, %vm72
    %vm77 = vmor %vm61, %vm73
    %vm78 = vmor %vm62, %vm74
    %vm79 = vmor %vm63, %vm75
    %v80 = vadd.s32 %v27, 72
    %v81 = vadd.s32 %v28, 72
    %82 = vset.pattern.permute.xlu0 3
    %83 = vperm.xlu0 %82, %v80
    %v84 = vpop.permute.xlu0 %83
    %85 = vset.pattern.permute.xlu0 3
    %86 = vperm.xlu0 %85, %v81
    %v87 = vpop.permute.xlu0 %86
    %vm88 = vcmp.eq.s32.totalorder %v30, %v84
    %vm89 = vcmp.eq.s32.totalorder %v31, %v84
    %vm90 = vcmp.eq.s32.totalorder %v30, %v87
    %vm91 = vcmp.eq.s32.totalorder %v31, %v87
    %vm92 = vmor %vm76, %vm88
    %vm93 = vmor %vm77, %vm89
    %vm94 = vmor %vm78, %vm90
    %vm95 = vmor %vm79, %vm91
    %v96 = vadd.s32 %v27, 96
    %v97 = vadd.s32 %v28, 96
    %98 = vset.pattern.permute.xlu0 4
    %99 = vperm.xlu0 %98, %v96
    %v100 = vpop.permute.xlu0 %99
    %101 = vset.pattern.permute.xlu0 4
    %102 = vperm.xlu0 %101, %v97
    %v103 = vpop.permute.xlu0 %102
    %vm104 = vcmp.eq.s32.totalorder %v30, %v100
    %vm105 = vcmp.eq.s32.totalorder %v31, %v100
    %vm106 = vcmp.eq.s32.totalorder %v30, %v103
    %vm107 = vcmp.eq.s32.totalorder %v31, %v103
    %vm108 = vmor %vm92, %vm104
    %vm109 = vmor %vm93, %vm105
    %vm110 = vmor %vm94, %vm106
    %vm111 = vmor %vm95, %vm107
    %v112 = vadd.s32 %v27, 120
    %v113 = vadd.s32 %v28, 120
    %114 = vset.pattern.permute.xlu0 5
    %115 = vperm.xlu0 %114, %v112
    %v116 = vpop.permute.xlu0 %115
    %117 = vset.pattern.permute.xlu0 5
    %118 = vperm.xlu0 %117, %v113
    %v119 = vpop.permute.xlu0 %118
    %vm120 = vcmp.eq.s32.totalorder %v30, %v116
    %vm121 = vcmp.eq.s32.totalorder %v31, %v116
    %vm122 = vcmp.eq.s32.totalorder %v30, %v119
    %vm123 = vcmp.eq.s32.totalorder %v31, %v119
    %vm124 = vmor %vm108, %vm120
    %vm125 = vmor %vm109, %vm121
    %vm126 = vmor %vm110, %vm122
    %vm127 = vmor %vm111, %vm123
    %v128 = vadd.s32 %v27, 144
    %v129 = vadd.s32 %v28, 144
    %130 = vset.pattern.permute.xlu0 6
    %131 = vperm.xlu0 %130, %v128
    %v132 = vpop.permute.xlu0 %131
    %133 = vset.pattern.permute.xlu0 6
    %134 = vperm.xlu0 %133, %v129
    %v135 = vpop.permute.xlu0 %134
    %vm136 = vcmp.eq.s32.totalorder %v30, %v132
    %vm137 = vcmp.eq.s32.totalorder %v31, %v132
    %vm138 = vcmp.eq.s32.totalorder %v30, %v135
    %vm139 = vcmp.eq.s32.totalorder %v31, %v135
    %vm140 = vmor %vm124, %vm136
    %vm141 = vmor %vm125, %vm137
    %vm142 = vmor %vm126, %vm138
    %vm143 = vmor %vm127, %vm139
    %v144 = vadd.s32 %v27, 168
    %v145 = vadd.s32 %v28, 168
    %146 = vset.pattern.permute.xlu0 7
    %147 = vperm.xlu0 %146, %v144
    %v148 = vpop.permute.xlu0 %147
    %149 = vset.pattern.permute.xlu0 7
    %150 = vperm.xlu0 %149, %v145
    %v151 = vpop.permute.xlu0 %150
    %vm152 = vcmp.eq.s32.totalorder %v30, %v148
    %vm153 = vcmp.eq.s32.totalorder %v31, %v148
    %vm154 = vcmp.eq.s32.totalorder %v30, %v151
    %vm155 = vcmp.eq.s32.totalorder %v31, %v151
    %vm156 = vmor %vm140, %vm152
    %vm157 = vmor %vm141, %vm153
    %vm158 = vmor %vm142, %vm154
    %vm159 = vmor %vm143, %vm155
    %v160 = vsel %vm156, 1.0, 0.0
    %v161 = vsel %vm157, 1.0, 0.0
    %v162 = vsel %vm158, 1.0, 0.0
    %v163 = vsel %vm159, 1.0, 0.0
    %v164 = vpack.c.bf16 %v162, %v160
    %v165 = vpack.c.bf16 %v163, %v161
    %v166 = vld [vmem:[#allocation2] sm:$0xff]
    %v167 = vld [vmem:[#allocation2 + $0x8] sm:$0xff]
    %v168 = vld [vmem:[#allocation2 + $0x10] sm:$0xff]
    %v169 = vld [vmem:[#allocation2 + $0x18] sm:$0xff]
    %v170 = vld [vmem:[#allocation2 + $0x20] sm:$0xff]
    %v171 = vld [vmem:[#allocation2 + $0x28] sm:$0xff]
    %v172 = vld [vmem:[#allocation2 + $0x30] sm:$0xff]
    %v173 = vld [vmem:[#allocation2 + $0x38] sm:$0xff]
    %v174 = vld [vmem:[#allocation2 + $0x40] sm:$0xff]
    %v175 = vld [vmem:[#allocation2 + $0x48] sm:$0xff]
    %v176 = vld [vmem:[#allocation2 + $0x50] sm:$0xff]
    %v177 = vld [vmem:[#allocation2 + $0x58] sm:$0xff]
    %v178 = vld [vmem:[#allocation2 + $0x60] sm:$0xff]
    %v179 = vld [vmem:[#allocation2 + $0x68] sm:$0xff]
    %v180 = vld [vmem:[#allocation2 + $0x70] sm:$0xff]
    %v181 = vld [vmem:[#allocation2 + $0x78] sm:$0xff]
    %v182 = vld [vmem:[#allocation2 + $0x80] sm:$0xff]
    %v183 = vld [vmem:[#allocation2 + $0x88] sm:$0xff]
    %v184 = vld [vmem:[#allocation2 + $0x90] sm:$0xff]
    %v185 = vld [vmem:[#allocation2 + $0x98] sm:$0xff]
    %v186 = vld [vmem:[#allocation2 + $0xa0] sm:$0xff]
    %v187 = vld [vmem:[#allocation2 + $0xa8] sm:$0xff]
    %v188 = vld [vmem:[#allocation2 + $0xb0] sm:$0xff]
    %v189 = vld [vmem:[#allocation2 + $0xb8] sm:$0xff]
    %v190 = vld [vmem:[#allocation2 + $0xc0] sm:$0xff]
    %v191 = vld [vmem:[#allocation2 + $0xc8] sm:$0xff]
    %v192 = vld [vmem:[#allocation2 + $0xd0] sm:$0xff]
    %v193 = vld [vmem:[#allocation2 + $0xd8] sm:$0xff]
    %v194 = vld [vmem:[#allocation2 + $0xe0] sm:$0xff]
    %v195 = vld [vmem:[#allocation2 + $0xe8] sm:$0xff]
    %v196 = vld [vmem:[#allocation2 + $0xf0] sm:$0xff]
    %v197 = vld [vmem:[#allocation2 + $0xf8] sm:$0xff]
    %v198 = vld [vmem:[#allocation2 + $0x100] sm:$0xff]
    %v199 = vld [vmem:[#allocation2 + $0x108] sm:$0xff]
    %v200 = vld [vmem:[#allocation2 + $0x110] sm:$0xff]
    %v201 = vld [vmem:[#allocation2 + $0x118] sm:$0xff]
    %v202 = vld [vmem:[#allocation2 + $0x120] sm:$0xff]
    %v203 = vld [vmem:[#allocation2 + $0x128] sm:$0xff]
    %v204 = vld [vmem:[#allocation2 + $0x130] sm:$0xff]
    %v205 = vld [vmem:[#allocation2 + $0x138] sm:$0xff]
    %v206 = vld [vmem:[#allocation2 + $0x140] sm:$0xff]
    %v207 = vld [vmem:[#allocation2 + $0x148] sm:$0xff]
    %v208 = vld [vmem:[#allocation2 + $0x150] sm:$0xff]
    %v209 = vld [vmem:[#allocation2 + $0x158] sm:$0xff]
    %v210 = vld [vmem:[#allocation2 + $0x160] sm:$0xff]
    %v211 = vld [vmem:[#allocation2 + $0x168] sm:$0xff]
    %v212 = vld [vmem:[#allocation2 + $0x170] sm:$0xff]
    %v213 = vld [vmem:[#allocation2 + $0x178] sm:$0xff]
    %v214 = vld [vmem:[#allocation2 + $0x180] sm:$0xff]
    %v215 = vld [vmem:[#allocation2 + $0x188] sm:$0xff]
    %v216 = vld [vmem:[#allocation2 + $0x190] sm:$0xff]
    %v217 = vld [vmem:[#allocation2 + $0x198] sm:$0xff]
    %v218 = vld [vmem:[#allocation2 + $0x1a0] sm:$0xff]
    %v219 = vld [vmem:[#allocation2 + $0x1a8] sm:$0xff]
    %v220 = vld [vmem:[#allocation2 + $0x1b0] sm:$0xff]
    %v221 = vld [vmem:[#allocation2 + $0x1b8] sm:$0xff]
    %v222 = vld [vmem:[#allocation2 + $0x1c0] sm:$0xff]
    %v223 = vld [vmem:[#allocation2 + $0x1c8] sm:$0xff]
    %v224 = vld [vmem:[#allocation2 + $0x1d0] sm:$0xff]
    %v225 = vld [vmem:[#allocation2 + $0x1d8] sm:$0xff]
    %v226 = vld [vmem:[#allocation2 + $0x1e0] sm:$0xff]
    %v227 = vld [vmem:[#allocation2 + $0x1e8] sm:$0xff]
    %v228 = vld [vmem:[#allocation2 + $0x1f0] sm:$0xff]
    %v229 = vld [vmem:[#allocation2 + $0x1f8] sm:$0xff]
    %v230 = vld [vmem:[#allocation2 + $0x200] sm:$0xff]
    %v231 = vld [vmem:[#allocation2 + $0x208] sm:$0xff]
    %v232 = vld [vmem:[#allocation2 + $0x210] sm:$0xff]
    %v233 = vld [vmem:[#allocation2 + $0x218] sm:$0xff]
    %v234 = vld [vmem:[#allocation2 + $0x220] sm:$0xff]
    %v235 = vld [vmem:[#allocation2 + $0x228] sm:$0xff]
    %v236 = vld [vmem:[#allocation2 + $0x230] sm:$0xff]
    %v237 = vld [vmem:[#allocation2 + $0x238] sm:$0xff]
    %v310 = vunpack.c.l.b16 %v166
    %v311 = vunpack.c.h.b16 %v166
    %v312 = vunpack.c.l.b16 %v167
    %v313 = vunpack.c.h.b16 %v167
    %v314 = vunpack.c.l.b16 %v168
    %v315 = vunpack.c.h.b16 %v168
    %v316 = vunpack.c.l.b16 %v169
    %v317 = vunpack.c.h.b16 %v169
    %v318 = vunpack.c.l.b16 %v170
    %v319 = vunpack.c.h.b16 %v170
    %v320 = vunpack.c.l.b16 %v171
    %v321 = vunpack.c.h.b16 %v171
    %v322 = vunpack.c.l.b16 %v172
    %v323 = vunpack.c.h.b16 %v172
    %v324 = vunpack.c.l.b16 %v173
    %v325 = vunpack.c.h.b16 %v173
    %v326 = vunpack.c.l.b16 %v174
    %v327 = vunpack.c.h.b16 %v174
    %v328 = vunpack.c.l.b16 %v175
    %v329 = vunpack.c.h.b16 %v175
    %v330 = vunpack.c.l.b16 %v176
    %v331 = vunpack.c.h.b16 %v176
    %v332 = vunpack.c.l.b16 %v177
    %v333 = vunpack.c.h.b16 %v177
    %v334 = vunpack.c.l.b16 %v178
    %v335 = vunpack.c.h.b16 %v178
    %v336 = vunpack.c.l.b16 %v179
    %v337 = vunpack.c.h.b16 %v179
    %v338 = vunpack.c.l.b16 %v180
    %v339 = vunpack.c.h.b16 %v180
    %v340 = vunpack.c.l.b16 %v181
    %v341 = vunpack.c.h.b16 %v181
    %v342 = vunpack.c.l.b16 %v182
    %v343 = vunpack.c.h.b16 %v182
    %v344 = vunpack.c.l.b16 %v183
    %v345 = vunpack.c.h.b16 %v183
    %v346 = vunpack.c.l.b16 %v184
    %v347 = vunpack.c.h.b16 %v184
    %v348 = vunpack.c.l.b16 %v185
    %v349 = vunpack.c.h.b16 %v185
    %v350 = vunpack.c.l.b16 %v186
    %v351 = vunpack.c.h.b16 %v186
    %v352 = vunpack.c.l.b16 %v187
    %v353 = vunpack.c.h.b16 %v187
    %v354 = vunpack.c.l.b16 %v188
    %v355 = vunpack.c.h.b16 %v188
    %v356 = vunpack.c.l.b16 %v189
    %v357 = vunpack.c.h.b16 %v189
    %v358 = vunpack.c.l.b16 %v190
    %v359 = vunpack.c.h.b16 %v190
    %v360 = vunpack.c.l.b16 %v191
    %v361 = vunpack.c.h.b16 %v191
    %v362 = vunpack.c.l.b16 %v192
    %v363 = vunpack.c.h.b16 %v192
    %v364 = vunpack.c.l.b16 %v193
    %v365 = vunpack.c.h.b16 %v193
    %v366 = vunpack.c.l.b16 %v194
    %v367 = vunpack.c.h.b16 %v194
    %v368 = vunpack.c.l.b16 %v195
    %v369 = vunpack.c.h.b16 %v195
    %v370 = vunpack.c.l.b16 %v196
    %v371 = vunpack.c.h.b16 %v196
    %v372 = vunpack.c.l.b16 %v197
    %v373 = vunpack.c.h.b16 %v197
    %v374 = vunpack.c.l.b16 %v198
    %v375 = vunpack.c.h.b16 %v198
    %v376 = vunpack.c.l.b16 %v199
    %v377 = vunpack.c.h.b16 %v199
    %v378 = vunpack.c.l.b16 %v200
    %v379 = vunpack.c.h.b16 %v200
    %v380 = vunpack.c.l.b16 %v201
    %v381 = vunpack.c.h.b16 %v201
    %v382 = vunpack.c.l.b16 %v202
    %v383 = vunpack.c.h.b16 %v202
    %v384 = vunpack.c.l.b16 %v203
    %v385 = vunpack.c.h.b16 %v203
    %v386 = vunpack.c.l.b16 %v204
    %v387 = vunpack.c.h.b16 %v204
    %v388 = vunpack.c.l.b16 %v205
    %v389 = vunpack.c.h.b16 %v205
    %v390 = vunpack.c.l.b16 %v206
    %v391 = vunpack.c.h.b16 %v206
    %v392 = vunpack.c.l.b16 %v207
    %v393 = vunpack.c.h.b16 %v207
    %v394 = vunpack.c.l.b16 %v208
    %v395 = vunpack.c.h.b16 %v208
    %v396 = vunpack.c.l.b16 %v209
    %v397 = vunpack.c.h.b16 %v209
    %v398 = vunpack.c.l.b16 %v210
    %v399 = vunpack.c.h.b16 %v210
    %v400 = vunpack.c.l.b16 %v211
    %v401 = vunpack.c.h.b16 %v211
    %v402 = vunpack.c.l.b16 %v212
    %v403 = vunpack.c.h.b16 %v212
    %v404 = vunpack.c.l.b16 %v213
    %v405 = vunpack.c.h.b16 %v213
    %v406 = vunpack.c.l.b16 %v214
    %v407 = vunpack.c.h.b16 %v214
    %v408 = vunpack.c.l.b16 %v215
    %v409 = vunpack.c.h.b16 %v215
    %v410 = vunpack.c.l.b16 %v216
    %v411 = vunpack.c.h.b16 %v216
    %v412 = vunpack.c.l.b16 %v217
    %v413 = vunpack.c.h.b16 %v217
    %v414 = vunpack.c.l.b16 %v218
    %v415 = vunpack.c.h.b16 %v218
    %v416 = vunpack.c.l.b16 %v219
    %v417 = vunpack.c.h.b16 %v219
    %v418 = vunpack.c.l.b16 %v220
    %v419 = vunpack.c.h.b16 %v220
    %v420 = vunpack.c.l.b16 %v221
    %v421 = vunpack.c.h.b16 %v221
    %v422 = vunpack.c.l.b16 %v222
    %v423 = vunpack.c.h.b16 %v222
    %v424 = vunpack.c.l.b16 %v223
    %v425 = vunpack.c.h.b16 %v223
    %v426 = vunpack.c.l.b16 %v224
    %v427 = vunpack.c.h.b16 %v224
    %v428 = vunpack.c.l.b16 %v225
    %v429 = vunpack.c.h.b16 %v225
    %v430 = vunpack.c.l.b16 %v226
    %v431 = vunpack.c.h.b16 %v226
    %v432 = vunpack.c.l.b16 %v227
    %v433 = vunpack.c.h.b16 %v227
    %v434 = vunpack.c.l.b16 %v228
    %v435 = vunpack.c.h.b16 %v228
    %v436 = vunpack.c.l.b16 %v229
    %v437 = vunpack.c.h.b16 %v229
    %v438 = vunpack.c.l.b16 %v230
    %v439 = vunpack.c.h.b16 %v230
    %v440 = vunpack.c.l.b16 %v231
    %v441 = vunpack.c.h.b16 %v231
    %v442 = vunpack.c.l.b16 %v232
    %v443 = vunpack.c.h.b16 %v232
    %v444 = vunpack.c.l.b16 %v233
    %v445 = vunpack.c.h.b16 %v233
    %v446 = vunpack.c.l.b16 %v234
    %v447 = vunpack.c.h.b16 %v234
    %v448 = vunpack.c.l.b16 %v235
    %v449 = vunpack.c.h.b16 %v235
    %v450 = vunpack.c.l.b16 %v236
    %v451 = vunpack.c.h.b16 %v236
    %v452 = vunpack.c.l.b16 %v237
    %v453 = vunpack.c.h.b16 %v237
    %v454 = vpack.c.b16 %v316, %v310
    %v455 = vpack.c.b16 %v317, %v311
    %v456 = vpack.c.b16 %v318, %v312
    %v457 = vpack.c.b16 %v319, %v313
    %v458 = vpack.c.b16 %v320, %v314
    %v459 = vpack.c.b16 %v321, %v315
    %v460 = vpack.c.b16 %v328, %v322
    %v461 = vpack.c.b16 %v329, %v323
    %v462 = vpack.c.b16 %v330, %v324
    %v463 = vpack.c.b16 %v331, %v325
    %v464 = vpack.c.b16 %v332, %v326
    %v465 = vpack.c.b16 %v333, %v327
    %v466 = vpack.c.b16 %v340, %v334
    %v467 = vpack.c.b16 %v341, %v335
    %v468 = vpack.c.b16 %v342, %v336
    %v469 = vpack.c.b16 %v343, %v337
    %v470 = vpack.c.b16 %v344, %v338
    %v471 = vpack.c.b16 %v345, %v339
    %v472 = vpack.c.b16 %v352, %v346
    %v473 = vpack.c.b16 %v353, %v347
    %v474 = vpack.c.b16 %v354, %v348
    %v475 = vpack.c.b16 %v355, %v349
    %v476 = vpack.c.b16 %v356, %v350
    %v477 = vpack.c.b16 %v357, %v351
    %v478 = vpack.c.b16 %v364, %v358
    %v479 = vpack.c.b16 %v365, %v359
    %v480 = vpack.c.b16 %v366, %v360
    %v481 = vpack.c.b16 %v367, %v361
    %v482 = vpack.c.b16 %v368, %v362
    %v483 = vpack.c.b16 %v369, %v363
    %v484 = vpack.c.b16 %v376, %v370
    %v485 = vpack.c.b16 %v377, %v371
    %v486 = vpack.c.b16 %v378, %v372
    %v487 = vpack.c.b16 %v379, %v373
    %v488 = vpack.c.b16 %v380, %v374
    %v489 = vpack.c.b16 %v381, %v375
    %v490 = vpack.c.b16 %v388, %v382
    %v491 = vpack.c.b16 %v389, %v383
    %v492 = vpack.c.b16 %v390, %v384
    %v493 = vpack.c.b16 %v391, %v385
    %v494 = vpack.c.b16 %v392, %v386
    %v495 = vpack.c.b16 %v393, %v387
    %v496 = vpack.c.b16 %v400, %v394
    %v497 = vpack.c.b16 %v401, %v395
    %v498 = vpack.c.b16 %v402, %v396
    %v499 = vpack.c.b16 %v403, %v397
    %v500 = vpack.c.b16 %v404, %v398
    %v501 = vpack.c.b16 %v405, %v399
    %v502 = vpack.c.b16 %v412, %v406
    %v503 = vpack.c.b16 %v413, %v407
    %v504 = vpack.c.b16 %v414, %v408
    %v505 = vpack.c.b16 %v415, %v409
    %v506 = vpack.c.b16 %v416, %v410
    %v507 = vpack.c.b16 %v417, %v411
    %v508 = vpack.c.b16 %v424, %v418
    %v509 = vpack.c.b16 %v425, %v419
    %v510 = vpack.c.b16 %v426, %v420
    %v511 = vpack.c.b16 %v427, %v421
    %v512 = vpack.c.b16 %v428, %v422
    %v513 = vpack.c.b16 %v429, %v423
    %v514 = vpack.c.b16 %v436, %v430
    %v515 = vpack.c.b16 %v437, %v431
    %v516 = vpack.c.b16 %v438, %v432
    %v517 = vpack.c.b16 %v439, %v433
    %v518 = vpack.c.b16 %v440, %v434
    %v519 = vpack.c.b16 %v441, %v435
    %v520 = vpack.c.b16 %v448, %v442
    %v521 = vpack.c.b16 %v449, %v443
    %v522 = vpack.c.b16 %v450, %v444
    %v523 = vpack.c.b16 %v451, %v445
    %v524 = vpack.c.b16 %v452, %v446
    %v525 = vpack.c.b16 %v453, %v447
    %vm598 = vcmask 523264
    %v600 = vsel %vm598, %v165, 0
    %602 = vmatprep.subr.bf16.mxu0 %v497
    %603 = vmatpush1.bf16.msra.mxu0 %v496
    %604 = vmatprep.subr.bf16.mxu0 %v491
    %605 = vmatpush1.bf16.msra.mxu0 %v490
    %606 = vmatprep.subr.bf16.mxu0 %v485
    %607 = vmatpush1.bf16.msra.mxu0 %v484
    %608 = vmatprep.subr.bf16.mxu0 %v479
    %609 = vmatpush1.bf16.msra.mxu0 %v478
    %610 = vmatprep.subr.bf16.mxu0 %v473
    %611 = vmatpush1.bf16.msra.mxu0 %v472
    %612 = vmatprep.subr.bf16.mxu0 %v467
    %613 = vmatpush1.bf16.msra.mxu0 %v466
    %614 = vmatprep.subr.bf16.mxu0 %v461
    %615 = vmatpush1.bf16.msra.mxu0 %v460
    %616 = vmatprep.subr.bf16.mxu0 %v455
    %617 = vmatpush1.bf16.msra.mxu0 %v454
    %618 = vmatprep.subr.bf16.mxu0 0
    %619 = vmatpush2.bf16.msra.mxu0 0
    %620 = vmatprep.subr.bf16.mxu0 0
    %621 = vmatpush2.bf16.msra.mxu0 0
    %622 = vmatprep.subr.bf16.mxu0 0
    %623 = vmatpush2.bf16.msra.mxu0 0
    %624 = vmatprep.subr.bf16.mxu0 0
    %625 = vmatpush2.bf16.msra.mxu0 0
    %626 = vmatprep.subr.bf16.mxu0 %v521
    %627 = vmatpush2.bf16.msra.mxu0 %v520
    %628 = vmatprep.subr.bf16.mxu0 %v515
    %629 = vmatpush2.bf16.msra.mxu0 %v514
    %630 = vmatprep.subr.bf16.mxu0 %v509
    %631 = vmatpush2.bf16.msra.mxu0 %v508
    %632 = vmatprep.subr.bf16.mxu0 %v503
    %633 = vmatpush2.bf16.msra.mxu0 %v502
    %634 = vmatprep.mubr.bf16.mxu0 %v600
    %635 = vmatmul.mubr.bf16.gmra.mxu0 %v164
    %v636 = vpop.f32.mrf.mxu0
    %v637 = vadd.f32 0.0, %v636
    %v638 = vpop.f32.mrf.mxu0
    %v639 = vadd.f32 0.0, %v638
    %v640 = vpop.f32.mrf.mxu0
    %v641 = vadd.f32 0.0, %v640
    %v642 = vpop.f32.mrf.mxu0
    %v643 = vadd.f32 0.0, %v642
    %644 = vdwg.mxu0
    %645 = vmatprep.subr.bf16.mxu0 %v499
    %646 = vmatpush1.bf16.msra.mxu0 %v498
    %647 = vmatprep.subr.bf16.mxu0 %v493
    %648 = vmatpush1.bf16.msra.mxu0 %v492
    %649 = vmatprep.subr.bf16.mxu0 %v487
    %650 = vmatpush1.bf16.msra.mxu0 %v486
    %651 = vmatprep.subr.bf16.mxu0 %v481
    %652 = vmatpush1.bf16.msra.mxu0 %v480
    %653 = vmatprep.subr.bf16.mxu0 %v475
    %654 = vmatpush1.bf16.msra.mxu0 %v474
    %655 = vmatprep.subr.bf16.mxu0 %v469
    %656 = vmatpush1.bf16.msra.mxu0 %v468
    %657 = vmatprep.subr.bf16.mxu0 %v463
    %658 = vmatpush1.bf16.msra.mxu0 %v462
    %659 = vmatprep.subr.bf16.mxu0 %v457
    %660 = vmatpush1.bf16.msra.mxu0 %v456
    %661 = vmatprep.subr.bf16.mxu0 0
    %662 = vmatpush2.bf16.msra.mxu0 0
    %663 = vmatprep.subr.bf16.mxu0 0
    %664 = vmatpush2.bf16.msra.mxu0 0
    %665 = vmatprep.subr.bf16.mxu0 0
    %666 = vmatpush2.bf16.msra.mxu0 0
    %667 = vmatprep.subr.bf16.mxu0 0
    %668 = vmatpush2.bf16.msra.mxu0 0
    %669 = vmatprep.subr.bf16.mxu0 %v523
    %670 = vmatpush2.bf16.msra.mxu0 %v522
    %671 = vmatprep.subr.bf16.mxu0 %v517
    %672 = vmatpush2.bf16.msra.mxu0 %v516
    %673 = vmatprep.subr.bf16.mxu0 %v511
    %674 = vmatpush2.bf16.msra.mxu0 %v510
    %675 = vmatprep.subr.bf16.mxu0 %v505
    %676 = vmatpush2.bf16.msra.mxu0 %v504
    %677 = vmatprep.mubr.bf16.mxu0 %v600
    %678 = vmatmul.mubr.bf16.gmra.mxu0 %v164
    %v679 = vpop.f32.mrf.mxu0
    %v680 = vadd.f32 0.0, %v679
    %v681 = vpop.f32.mrf.mxu0
    %v682 = vadd.f32 0.0, %v681
    %v683 = vpop.f32.mrf.mxu0
    %v684 = vadd.f32 0.0, %v683
    %v685 = vpop.f32.mrf.mxu0
    %v686 = vadd.f32 0.0, %v685
    %687 = vdwg.mxu0
    %688 = vmatprep.subr.bf16.mxu0 %v501
    %689 = vmatpush1.bf16.msra.mxu0 %v500
    %690 = vmatprep.subr.bf16.mxu0 %v495
    %691 = vmatpush1.bf16.msra.mxu0 %v494
    %692 = vmatprep.subr.bf16.mxu0 %v489
    %693 = vmatpush1.bf16.msra.mxu0 %v488
    %694 = vmatprep.subr.bf16.mxu0 %v483
    %695 = vmatpush1.bf16.msra.mxu0 %v482
    %696 = vmatprep.subr.bf16.mxu0 %v477
    %697 = vmatpush1.bf16.msra.mxu0 %v476
    %698 = vmatprep.subr.bf16.mxu0 %v471
    %699 = vmatpush1.bf16.msra.mxu0 %v470
    %700 = vmatprep.subr.bf16.mxu0 %v465
    %701 = vmatpush1.bf16.msra.mxu0 %v464
    %702 = vmatprep.subr.bf16.mxu0 %v459
    %703 = vmatpush1.bf16.msra.mxu0 %v458
    %704 = vmatprep.subr.bf16.mxu0 0
    %705 = vmatpush2.bf16.msra.mxu0 0
    %706 = vmatprep.subr.bf16.mxu0 0
    %707 = vmatpush2.bf16.msra.mxu0 0
    %708 = vmatprep.subr.bf16.mxu0 0
    %709 = vmatpush2.bf16.msra.mxu0 0
    %710 = vmatprep.subr.bf16.mxu0 0
    %711 = vmatpush2.bf16.msra.mxu0 0
    %712 = vmatprep.subr.bf16.mxu0 %v525
    %713 = vmatpush2.bf16.msra.mxu0 %v524
    %714 = vmatprep.subr.bf16.mxu0 %v519
    %715 = vmatpush2.bf16.msra.mxu0 %v518
    %716 = vmatprep.subr.bf16.mxu0 %v513
    %717 = vmatpush2.bf16.msra.mxu0 %v512
    %718 = vmatprep.subr.bf16.mxu0 %v507
    %719 = vmatpush2.bf16.msra.mxu0 %v506
    %720 = vmatprep.mubr.bf16.mxu0 %v600
    %721 = vmatmul.mubr.bf16.gmra.mxu0 %v164
    %v722 = vpop.f32.mrf.mxu0
    %v723 = vadd.f32 0.0, %v722
    %v724 = vpop.f32.mrf.mxu0
    %v725 = vadd.f32 0.0, %v724
    %v726 = vpop.f32.mrf.mxu0
    %v727 = vadd.f32 0.0, %v726
    %v728 = vpop.f32.mrf.mxu0
    %v729 = vadd.f32 0.0, %v728
    %730 = vdwg.mxu0
    %733 = vrot.lane.b32.xlu0 %v637, 96
    %v734 = vpop.permute.xlu0 %733
    %735 = vrot.lane.b32.xlu0 %v641, 96
    %v736 = vpop.permute.xlu0 %735
    %v739 = vmax.f32 %v637, %v734
    %v740 = vmax.f32 %v641, %v736
    %741 = vrot.lane.b32.xlu0 %v637, 64
    %v742 = vpop.permute.xlu0 %741
    %743 = vrot.lane.b32.xlu0 %v641, 64
    %v744 = vpop.permute.xlu0 %743
    %v747 = vmax.f32 %v739, %v742
    %v748 = vmax.f32 %v740, %v744
    %749 = vrot.lane.b32.xlu0 %v637, 32
    %v750 = vpop.permute.xlu0 %749
    %751 = vrot.lane.b32.xlu0 %v641, 32
    %v752 = vpop.permute.xlu0 %751
    %v755 = vmax.f32 %v747, %v750
    %v756 = vmax.f32 %v748, %v752
    %v757 = vmax.f32 %v755, %v639
    %v758 = vmax.f32 %v756, %v643
    %761 = vrot.lane.b32.xlu0 %v639, 96
    %v762 = vpop.permute.xlu0 %761
    %763 = vrot.lane.b32.xlu0 %v643, 96
    %v764 = vpop.permute.xlu0 %763
    %v767 = vmax.f32 %v757, %v762
    %v768 = vmax.f32 %v758, %v764
    %769 = vrot.lane.b32.xlu0 %v639, 64
    %v770 = vpop.permute.xlu0 %769
    %771 = vrot.lane.b32.xlu0 %v643, 64
    %v772 = vpop.permute.xlu0 %771
    %v775 = vmax.f32 %v767, %v770
    %v776 = vmax.f32 %v768, %v772
    %v777 = vmax.f32 %v775, 0.0
    %v778 = vmax.f32 %v776, 0.0
    %781 = vrot.lane.b32.xlu0 %v777, 120
    %v782 = vpop.permute.xlu0 %781
    %783 = vrot.lane.b32.xlu0 %v778, 120
    %v784 = vpop.permute.xlu0 %783
    %v787 = vmax.f32 %v777, %v782
    %v788 = vmax.f32 %v778, %v784
    %789 = vrot.lane.b32.xlu0 %v777, 112
    %v790 = vpop.permute.xlu0 %789
    %791 = vrot.lane.b32.xlu0 %v778, 112
    %v792 = vpop.permute.xlu0 %791
    %v795 = vmax.f32 %v787, %v790
    %v796 = vmax.f32 %v788, %v792
    %797 = vrot.lane.b32.xlu0 %v777, 104
    %v798 = vpop.permute.xlu0 %797
    %799 = vrot.lane.b32.xlu0 %v778, 104
    %v800 = vpop.permute.xlu0 %799
    %v803 = vmax.f32 %v795, %v798
    %v804 = vmax.f32 %v796, %v800
    %807 = vrot.lane.b32.xlu0 %v680, 96
    %v808 = vpop.permute.xlu0 %807
    %809 = vrot.lane.b32.xlu0 %v684, 96
    %v810 = vpop.permute.xlu0 %809
    %v813 = vmax.f32 %v639, %v808
    %v814 = vmax.f32 %v643, %v810
    %815 = vrot.lane.b32.xlu0 %v680, 64
    %v816 = vpop.permute.xlu0 %815
    %817 = vrot.lane.b32.xlu0 %v684, 64
    %v818 = vpop.permute.xlu0 %817
    %v821 = vmax.f32 %v813, %v816
    %v822 = vmax.f32 %v814, %v818
    %823 = vrot.lane.b32.xlu0 %v680, 32
    %v824 = vpop.permute.xlu0 %823
    %825 = vrot.lane.b32.xlu0 %v684, 32
    %v826 = vpop.permute.xlu0 %825
    %v829 = vmax.f32 %v821, %v824
    %v830 = vmax.f32 %v822, %v826
    %v831 = vmax.f32 %v829, %v680
    %v832 = vmax.f32 %v830, %v684
    %835 = vrot.lane.b32.xlu0 %v682, 96
    %v836 = vpop.permute.xlu0 %835
    %837 = vrot.lane.b32.xlu0 %v686, 96
    %v838 = vpop.permute.xlu0 %837
    %v841 = vmax.f32 %v831, %v836
    %v842 = vmax.f32 %v832, %v838
    %v843 = vmax.f32 %v841, 0.0
    %v844 = vmax.f32 %v842, 0.0
    %847 = vrot.lane.b32.xlu0 %v843, 120
    %v848 = vpop.permute.xlu0 %847
    %849 = vrot.lane.b32.xlu0 %v844, 120
    %v850 = vpop.permute.xlu0 %849
    %v853 = vmax.f32 %v843, %v848
    %v854 = vmax.f32 %v844, %v850
    %855 = vrot.lane.b32.xlu0 %v843, 112
    %v856 = vpop.permute.xlu0 %855
    %857 = vrot.lane.b32.xlu0 %v844, 112
    %v858 = vpop.permute.xlu0 %857
    %v861 = vmax.f32 %v853, %v856
    %v862 = vmax.f32 %v854, %v858
    %863 = vrot.lane.b32.xlu0 %v843, 104
    %v864 = vpop.permute.xlu0 %863
    %865 = vrot.lane.b32.xlu0 %v844, 104
    %v866 = vpop.permute.xlu0 %865
    %v869 = vmax.f32 %v861, %v864
    %v870 = vmax.f32 %v862, %v866
    %v871 = vmax.f32 %v682, %v836
    %v872 = vmax.f32 %v686, %v838
    %873 = vrot.lane.b32.xlu0 %v682, 64
    %v874 = vpop.permute.xlu0 %873
    %875 = vrot.lane.b32.xlu0 %v686, 64
    %v876 = vpop.permute.xlu0 %875
    %v879 = vmax.f32 %v871, %v874
    %v880 = vmax.f32 %v872, %v876
    %883 = vrot.lane.b32.xlu0 %v723, 32
    %v884 = vpop.permute.xlu0 %883
    %885 = vrot.lane.b32.xlu0 %v727, 32
    %v886 = vpop.permute.xlu0 %885
    %v889 = vmax.f32 %v879, %v884
    %v890 = vmax.f32 %v880, %v886
    %v891 = vmax.f32 %v889, %v723
    %v892 = vmax.f32 %v890, %v727
    %v893 = vmax.f32 %v891, 0.0
    %v894 = vmax.f32 %v892, 0.0
    %897 = vrot.lane.b32.xlu0 %v893, 120
    %v898 = vpop.permute.xlu0 %897
    %899 = vrot.lane.b32.xlu0 %v894, 120
    %v900 = vpop.permute.xlu0 %899
    %v903 = vmax.f32 %v893, %v898
    %v904 = vmax.f32 %v894, %v900
    %905 = vrot.lane.b32.xlu0 %v893, 112
    %v906 = vpop.permute.xlu0 %905
    %907 = vrot.lane.b32.xlu0 %v894, 112
    %v908 = vpop.permute.xlu0 %907
    %v911 = vmax.f32 %v903, %v906
    %v912 = vmax.f32 %v904, %v908
    %913 = vrot.lane.b32.xlu0 %v893, 104
    %v914 = vpop.permute.xlu0 %913
    %915 = vrot.lane.b32.xlu0 %v894, 104
    %v916 = vpop.permute.xlu0 %915
    %v919 = vmax.f32 %v911, %v914
    %v920 = vmax.f32 %v912, %v916
    %921 = vrot.lane.b32.xlu0 %v723, 96
    %v922 = vpop.permute.xlu0 %921
    %923 = vrot.lane.b32.xlu0 %v727, 96
    %v924 = vpop.permute.xlu0 %923
    %v927 = vmax.f32 %v723, %v922
    %v928 = vmax.f32 %v727, %v924
    %931 = vrot.lane.b32.xlu0 %v725, 64
    %v932 = vpop.permute.xlu0 %931
    %933 = vrot.lane.b32.xlu0 %v729, 64
    %v934 = vpop.permute.xlu0 %933
    %v937 = vmax.f32 %v927, %v932
    %v938 = vmax.f32 %v928, %v934
    %939 = vrot.lane.b32.xlu0 %v725, 32
    %v940 = vpop.permute.xlu0 %939
    %941 = vrot.lane.b32.xlu0 %v729, 32
    %v942 = vpop.permute.xlu0 %941
    %v945 = vmax.f32 %v937, %v940
    %v946 = vmax.f32 %v938, %v942
    %v947 = vmax.f32 %v945, 0.0
    %v948 = vmax.f32 %v946, 0.0
    %951 = vrot.lane.b32.xlu0 %v947, 120
    %v952 = vpop.permute.xlu0 %951
    %953 = vrot.lane.b32.xlu0 %v948, 120
    %v954 = vpop.permute.xlu0 %953
    %v957 = vmax.f32 %v947, %v952
    %v958 = vmax.f32 %v948, %v954
    %959 = vrot.lane.b32.xlu0 %v947, 112
    %v960 = vpop.permute.xlu0 %959
    %961 = vrot.lane.b32.xlu0 %v948, 112
    %v962 = vpop.permute.xlu0 %961
    %v965 = vmax.f32 %v957, %v960
    %v966 = vmax.f32 %v958, %v962
    %967 = vrot.lane.b32.xlu0 %v947, 104
    %v968 = vpop.permute.xlu0 %967
    %969 = vrot.lane.b32.xlu0 %v948, 104
    %v970 = vpop.permute.xlu0 %969
    %v973 = vmax.f32 %v965, %v968
    %v974 = vmax.f32 %v966, %v970
    %977 = vrot.lane.b32.xlu0 %v869, 40
    %v978 = vpop.permute.xlu0 %977
    %979 = vrot.lane.b32.xlu0 %v870, 40
    %v980 = vpop.permute.xlu0 %979
    %985 = vrot.lane.b32.xlu0 %v919, 112
    %v986 = vpop.permute.xlu0 %985
    %987 = vrot.lane.b32.xlu0 %v920, 112
    %v988 = vpop.permute.xlu0 %987
    %993 = vrot.lane.b32.xlu0 %v973, 88
    %v994 = vpop.permute.xlu0 %993
    %995 = vrot.lane.b32.xlu0 %v974, 88
    %v996 = vpop.permute.xlu0 %995
    %vm999 = vcmask 64512
    %v1000 = vsel %vm999, %v803, %v978
    %v1001 = vsel %vm999, %v804, %v980
    %vm1002 = vcmask 130048
    %v1003 = vsel %vm1002, %v1000, %v986
    %v1004 = vsel %vm1002, %v1001, %v988
    %vm1005 = vcmask 195584
    %v1006 = vsel %vm1005, %v1003, %v994
    %v1007 = vsel %vm1005, %v1004, %v996
    %vm1008 = vcmask 261120
    %1009 = vst.msk [vmem:[#allocation5] sm:$0xff] %vm1008, %v1006
    %1010 = vst.msk [vmem:[#allocation5 + $0x8] sm:$0xff] %vm1008, %v1007
    // Predicated region
    $region14: #{tpu_custom_call.1} parent=1 // pred_check
      _
    $region15: #{tpu_custom_call.1} parent=1 // pred_check_branch
      %1012 = sbr.rel (0) target = $region17
    $region16: #{tpu_custom_call.1} parent=1 // pred_region
      %s1014 = ssub.s32 256, 256
      %1015 = vsyncadd [#allocation4], %s1014
      %s1016 = sshll.u32 [#allocation5], 4
      %s1017 = int_to_ptr.vmem [resolvable:$true] %s1016
      %1022 = dma.vmem_to_hbm [thread:$0]  %s1017, 256, %s2, [#allocation4], 128, 128, 8
    $region17: #{tpu_custom_call.1} parent=1 // pred_fallthru
      _
    // Predicated region
    $region18: #{tpu_custom_call.1} parent=1 // pred_check
      _
    $region19: #{tpu_custom_call.1} parent=1 // pred_check_branch
      %1024 = sbr.rel (0) target = $region21
    $region20: #{tpu_custom_call.1} parent=1 // pred_region
      %1025 = dma.done [#allocation4], 256
    $region21: #{tpu_custom_call.1} parent=1 // pred_fallthru
      _
    %1026 = vsyncpa [#allocation3], 1
    %1027 = vsyncpa [#allocation4], 1

</llo_original>
